<compile_context>
chip_gen: v5e
topology: v5e:2x2
jax: 0.10.0
libtpu: 0.0.40
codegen_flags: <defaults>
</compile_context>

<pallas_src>
import functools

import numpy as np

import jax
import jax.numpy as jnp
from jax.experimental import pallas as pl
from jax.experimental.pallas import tpu as pltpu


def _bilinear_weights(out_size, in_size, align_corners=False):
    """(out_size, in_size) interpolation matrix matching F.upsample(bilinear)."""
    w = np.zeros((out_size, in_size), dtype=np.float32)
    if in_size == 1:
        w[:, 0] = 1.0
        return w
    for i in range(out_size):
        if align_corners:
            src = 0.0 if out_size == 1 else i * (in_size - 1) / (out_size - 1)
        else:
            # PyTorch align_corners=False (modern F.upsample / F.interpolate).
            src = max((i + 0.5) * in_size / out_size - 0.5, 0.0)
        i0 = min(int(np.floor(src)), in_size - 1)
        i1 = min(i0 + 1, in_size - 1)
        frac = src - i0
        w[i, i0] += 1.0 - frac
        w[i, i1] += frac
    return w


def _pick_row_tile(h_out, w_out, budget_bytes=2 << 20):
    """Largest H tile (multiple of 8 dividing H, or full H) whose f32 target
    tile stays under `budget_bytes` — keeps DMAs big without blowing VMEM."""
    if h_out * w_out * 4 <= budget_bytes:
        return h_out
    best = None
    for th in range(8, h_out, 8):
        if h_out % th == 0 and th * w_out * 4 <= budget_bytes:
            best = th
    # Fallback (H has no multiple-of-8 divisor in budget): full H. Rare for
    # real segmentation shapes.
    return best if best is not None else h_out


def _dsn_bce_kernel(pred_ref, wh_ref, wwt_ref, target_ref, out_ref, acc_ref):
    i = pl.program_id(0)
    j = pl.program_id(1)
    is_first = jnp.logical_and(i == 0, j == 0)
    is_last = jnp.logical_and(i == pl.num_programs(0) - 1,
                              j == pl.num_programs(1) - 1)

    @pl.when(is_first)
    def _():
        acc_ref[...] = jnp.zeros_like(acc_ref)

    # Bilinear upsample of this H-row tile via two MXU matmuls.
    p = pred_ref[0].astype(jnp.float32)                                   # (h, w)
    rows = jnp.dot(wh_ref[...].astype(jnp.float32), p,
                   preferred_element_type=jnp.float32)                    # (TH, w)
    x = jnp.dot(rows, wwt_ref[...].astype(jnp.float32),
                preferred_element_type=jnp.float32)                       # (TH, W)

    # Numerically stable BCE-with-logits; accumulate element-wise (VPU only).
    t = target_ref[0].astype(jnp.float32)                                 # (TH, W)
    bce = jnp.maximum(x, 0.0) - x * t + jnp.log(1.0 + jnp.exp(-jnp.abs(x)))
    acc_ref[...] += bce

    # Single deferred cross-lane reduction at the very end.
    @pl.when(is_last)
    def _():
        out_ref[...] = jnp.full((1, 1), jnp.sum(acc_ref[...]), dtype=jnp.float32)


def _upsampled_bce_sum(pred, target, align_corners):
    """Sum over all elements of BCEWithLogits(upsample(pred, target.shape), target)."""
    n, c, h, w = pred.shape
    _, _, ho, wo = target.shape
    nc = n * c
    th = _pick_row_tile(ho, wo)
    n_th = ho // th

    wh = jnp.asarray(_bilinear_weights(ho, h, align_corners))        # (H, h)
    wwt = jnp.asarray(_bilinear_weights(wo, w, align_corners).T)     # (w, W)

    pred_nc = pred.reshape(nc, h, w)
    target_nc = target.reshape(nc, ho, wo)

    total = pl.pallas_call(
        _dsn_bce_kernel,
        out_shape=jax.ShapeDtypeStruct((1, 1), jnp.float32),
        grid_spec=pltpu.PrefetchScalarGridSpec(
            num_scalar_prefetch=0,
            grid=(nc, n_th),
            in_specs=[
                pl.BlockSpec((1, h, w), lambda i, j: (i, 0, 0)),     # low-res logits
                pl.BlockSpec((th, h), lambda i, j: (j, 0)),          # row weights
                pl.BlockSpec((w, wo), lambda i, j: (0, 0)),          # col weights^T
                pl.BlockSpec((1, th, wo), lambda i, j: (i, j, 0)),   # target tile
            ],
            out_specs=pl.BlockSpec((1, 1), lambda i, j: (0, 0)),
            scratch_shapes=[pltpu.VMEM((th, wo), jnp.float32)],
        ),
        compiler_params=pltpu.CompilerParams(
            dimension_semantics=("arbitrary", "arbitrary"),
        ),
    )(pred_nc, wh, wwt, target_nc)
    return total[0, 0], nc * ho * wo


@functools.partial(jax.jit, static_argnames=("dsn_weight", "align_corners"))
def criterion_dsn(preds, target, dsn_weight=0.4, align_corners=False):
    """Equivalent of CriterionDSN.forward(preds, target) -> scalar loss."""
    s0, cnt0 = _upsampled_bce_sum(preds[0], target, align_corners)
    s1, cnt1 = _upsampled_bce_sum(preds[1], target, align_corners)
    loss1 = s0 / cnt0
    loss2 = s1 / cnt1
    return dsn_weight * loss1 + loss2


def _reference(preds, target, dsn_weight=0.4, align_corners=False):
    """Pure numpy float64 reference (upsample + BCEWithLogits mean)."""
    t = np.asarray(target, dtype=np.float64)
    ho, wo = t.shape[2], t.shape[3]

    def one(pred):
        p = np.asarray(pred, dtype=np.float64)
        wh = _bilinear_weights(ho, p.shape[2], align_corners).astype(np.float64)
        ww = _bilinear_weights(wo, p.shape[3], align_corners).astype(np.float64)
        up = np.einsum("Hh,nchw,Ww->ncHW", wh, p, ww)
        bce = np.maximum(up, 0.0) - up * t + np.log1p(np.exp(-np.abs(up)))
        return bce.mean()

    return dsn_weight * one(preds[0]) + one(preds[1])


if __name__ == "__main__":
    key = jax.random.PRNGKey(0)
    k0, k1, k2 = jax.random.split(key, 3)
    # Deep-supervision logits at two scales (NCHW) + binary target at full res.
    pred0 = jax.random.normal(k0, (2, 4, 8, 8), dtype=jnp.float32)
    pred1 = jax.random.normal(k1, (2, 4, 16, 16), dtype=jnp.float32)
    target = (jax.random.uniform(k2, (2, 4, 16, 16)) > 0.5).astype(jnp.float32)

    loss = criterion_dsn((pred0, pred1), target)
    jax.block_until_ready(loss)

    ref = _reference((pred0, pred1), target)
    assert abs(float(loss) - float(ref)) < 2e-3, (float(loss), float(ref))
    print("KERNEL_OK")
</pallas_src>

<mosaic_0001>
module attributes {stable_mosaic.version = 11 : i64} {
  func.func @_dsn_bce_kernel(%arg0: i32, %arg1: i32, %arg2: memref<1x8x8xf32, #tpu.memory_space<vmem>>, %arg3: memref<16x8xf32, #tpu.memory_space<vmem>>, %arg4: memref<8x16xf32, #tpu.memory_space<vmem>>, %arg5: memref<1x16x16xf32, #tpu.memory_space<vmem>>, %arg6: memref<1x1xf32, #tpu.memory_space<vmem>>, %arg7: memref<16x16xf32, #tpu.memory_space<vmem>>) attributes {dimension_semantics = [#tpu.dimension_semantics<arbitrary>, #tpu.dimension_semantics<arbitrary>], iteration_bounds = array<i64: 8, 1>, scalar_prefetch = 0 : i64, scratch_operands = 1 : i64, tpu.core_type = #tpu.core_type<tc>, window_params = [{transform_indices = @transform_0, window_bounds = array<i64: 1, 8, 8>}, {transform_indices = @transform_1, window_bounds = array<i64: 16, 8>}, {pipeline_mode = #tpu.pipeline_mode<synchronous>, transform_indices = @transform_2, window_bounds = array<i64: 8, 16>}, {transform_indices = @transform_3, window_bounds = array<i64: 1, 16, 16>}, {pipeline_mode = #tpu.pipeline_mode<synchronous>, transform_indices = @transform_4, window_bounds = array<i64: 1, 1>}]} {
    %c0_i32 = arith.constant 0 : i32
    %0 = arith.cmpi eq, %arg0, %c0_i32 : i32
    %c0_i32_0 = arith.constant 0 : i32
    %1 = arith.cmpi eq, %arg1, %c0_i32_0 : i32
    %2 = arith.andi %0, %1 : i1
    %c7_i32 = arith.constant 7 : i32
    %3 = arith.cmpi eq, %arg0, %c7_i32 : i32
    %c0_i32_1 = arith.constant 0 : i32
    %4 = arith.cmpi eq, %arg1, %c0_i32_1 : i32
    %5 = arith.andi %3, %4 : i1
    %6 = arith.extui %2 : i1 to i32
    %c0_i32_2 = arith.constant 0 : i32
    %7 = arith.cmpi ne, %6, %c0_i32_2 : i32
    scf.if %7 {
      %cst_21 = arith.constant 0.000000e+00 : f32
      %33 = vector.broadcast %cst_21 : f32 to vector<16x16xf32>
      %c0_22 = arith.constant 0 : index
      %c0_23 = arith.constant 0 : index
      %34 = vector.load %arg7[%c0_22, %c0_23] : memref<16x16xf32, #tpu.memory_space<vmem>>, vector<16x16xf32>
      tpu.vector_store %arg7[%c0_22, %c0_23], %33 {strides = array<i32>} : memref<16x16xf32, #tpu.memory_space<vmem>>, vector<16x16xf32>,
    } else {
    }
    %c0 = arith.constant 0 : index
    %c0_3 = arith.constant 0 : index
    %c0_4 = arith.constant 0 : index
    %8 = vector.load %arg2[%c0, %c0_3, %c0_4] : memref<1x8x8xf32, #tpu.memory_space<vmem>>, vector<1x8x8xf32>
    %9 = vector.shape_cast %8 : vector<1x8x8xf32> to vector<8x8xf32>
    %c0_5 = arith.constant 0 : index
    %c0_6 = arith.constant 0 : index
    %10 = vector.load %arg3[%c0_5, %c0_6] : memref<16x8xf32, #tpu.memory_space<vmem>>, vector<16x8xf32>
    %cst = arith.constant dense<0.000000e+00> : vector<16x8xf32>
    %11 = tpu.matmul %10, %9, %cst {dimension_numbers = #tpu.dot_dimension_numbers<[1], [0], [0], [1], [0, 0, 1, 1], [], []>} : vector<16x8xf32>, vector<8x8xf32>, vector<16x8xf32> -> vector<16x8xf32>
    %c0_7 = arith.constant 0 : index
    %c0_8 = arith.constant 0 : index
    %12 = vector.load %arg4[%c0_7, %c0_8] : memref<8x16xf32, #tpu.memory_space<vmem>>, vector<8x16xf32>
    %cst_9 = arith.constant dense<0.000000e+00> : vector<16x16xf32>
    %13 = tpu.matmul %11, %12, %cst_9 {dimension_numbers = #tpu.dot_dimension_numbers<[1], [0], [0], [1], [0, 0, 1, 1], [], []>} : vector<16x8xf32>, vector<8x16xf32>, vector<16x16xf32> -> vector<16x16xf32>
    %c0_10 = arith.constant 0 : index
    %c0_11 = arith.constant 0 : index
    %c0_12 = arith.constant 0 : index
    %14 = vector.load %arg5[%c0_10, %c0_11, %c0_12] : memref<1x16x16xf32, #tpu.memory_space<vmem>>, vector<1x16x16xf32>
    %15 = vector.shape_cast %14 : vector<1x16x16xf32> to vector<16x16xf32>
    %cst_13 = arith.constant 0.000000e+00 : f32
    %16 = vector.broadcast %cst_13 : f32 to vector<16x16xf32>
    %17 = arith.maximumf %13, %16 : vector<16x16xf32>
    %18 = arith.mulf %13, %15 : vector<16x16xf32>
    %19 = arith.subf %17, %18 : vector<16x16xf32>
    %20 = math.absf %13 : vector<16x16xf32>
    %cst_14 = arith.constant 0.000000e+00 : f32
    %21 = vector.broadcast %cst_14 : f32 to vector<16x16xf32>
    %22 = arith.subf %21, %20 : vector<16x16xf32>
    %23 = math.exp %22 : vector<16x16xf32>
    %cst_15 = arith.constant 1.000000e+00 : f32
    %24 = vector.broadcast %cst_15 : f32 to vector<16x16xf32>
    %25 = arith.addf %24, %23 : vector<16x16xf32>
    %26 = math.log %25 : vector<16x16xf32>
    %27 = arith.addf %19, %26 : vector<16x16xf32>
    %c0_16 = arith.constant 0 : index
    %c0_17 = arith.constant 0 : index
    %28 = vector.load %arg7[%c0_16, %c0_17] : memref<16x16xf32, #tpu.memory_space<vmem>>, vector<16x16xf32>
    %29 = arith.addf %28, %27 : vector<16x16xf32>
    %c0_18 = arith.constant 0 : index
    %c0_19 = arith.constant 0 : index
    %30 = vector.load %arg7[%c0_18, %c0_19] : memref<16x16xf32, #tpu.memory_space<vmem>>, vector<16x16xf32>
    tpu.vector_store %arg7[%c0_18, %c0_19], %29 {strides = array<i32>} : memref<16x16xf32, #tpu.memory_space<vmem>>, vector<16x16xf32>,
    %31 = arith.extui %5 : i1 to i32
    %c0_i32_20 = arith.constant 0 : i32
    %32 = arith.cmpi ne, %31, %c0_i32_20 : i32
    scf.if %32 {
      %c0_21 = arith.constant 0 : index
      %c0_22 = arith.constant 0 : index
      %33 = vector.load %arg7[%c0_21, %c0_22] : memref<16x16xf32, #tpu.memory_space<vmem>>, vector<16x16xf32>
      %34 = vector.shape_cast %33 : vector<16x16xf32> to vector<1x16x16xf32>
      %cst_23 = arith.constant dense<0.000000e+00> : vector<1xf32>
      %35 = vector.multi_reduction <add>, %34, %cst_23 [1, 2] : vector<1x16x16xf32> to vector<1xf32>
      %36 = vector.shape_cast %35 : vector<1xf32> to vector<1x1x1xf32>
      %37 = vector.extract %36[0, 0, 0] : f32 from vector<1x1x1xf32>
      %38 = vector.broadcast %37 : f32 to vector<1x1xf32>
      %c0_24 = arith.constant 0 : index
      %c0_25 = arith.constant 0 : index
      %39 = vector.load %arg6[%c0_24, %c0_25] : memref<1x1xf32, #tpu.memory_space<vmem>>, vector<1x1xf32>
      tpu.vector_store %arg6[%c0_24, %c0_25], %38 {strides = array<i32>} : memref<1x1xf32, #tpu.memory_space<vmem>>, vector<1x1xf32>,
    } else {
    }
    return
  }
  func.func @transform_0(%arg0: i32, %arg1: i32) -> (i32, i32, i32) {
    %c0_i32 = arith.constant 0 : i32
    %c0_i32_0 = arith.constant 0 : i32
    %c0_i32_1 = arith.constant 0 : i32
    return %arg0, %c0_i32, %c0_i32_0 : i32, i32, i32
  }
  func.func @transform_1(%arg0: i32, %arg1: i32) -> (i32, i32) {
    %c0_i32 = arith.constant 0 : i32
    %c0_i32_0 = arith.constant 0 : i32
    return %arg1, %c0_i32 : i32, i32
  }
  func.func @transform_2(%arg0: i32, %arg1: i32) -> (i32, i32) {
    %c0_i32 = arith.constant 0 : i32
    %c0_i32_0 = arith.constant 0 : i32
    %c0_i32_1 = arith.constant 0 : i32
    return %c0_i32, %c0_i32_0 : i32, i32
  }
  func.func @transform_3(%arg0: i32, %arg1: i32) -> (i32, i32, i32) {
    %c0_i32 = arith.constant 0 : i32
    %c0_i32_0 = arith.constant 0 : i32
    return %arg0, %arg1, %c0_i32 : i32, i32, i32
  }
  func.func @transform_4(%arg0: i32, %arg1: i32) -> (i32, i32) {
    %c0_i32 = arith.constant 0 : i32
    %c0_i32_0 = arith.constant 0 : i32
    %c0_i32_1 = arith.constant 0 : i32
    return %c0_i32, %c0_i32_0 : i32, i32
  }
}

module attributes {stable_mosaic.version = 11 : i64} {
  func.func @_dsn_bce_kernel(%arg0: i32, %arg1: i32, %arg2: memref<1x16x16xf32, #tpu.memory_space<vmem>>, %arg3: memref<16x16xf32, #tpu.memory_space<vmem>>, %arg4: memref<16x16xf32, #tpu.memory_space<vmem>>, %arg5: memref<1x16x16xf32, #tpu.memory_space<vmem>>, %arg6: memref<1x1xf32, #tpu.memory_space<vmem>>, %arg7: memref<16x16xf32, #tpu.memory_space<vmem>>) attributes {dimension_semantics = [#tpu.dimension_semantics<arbitrary>, #tpu.dimension_semantics<arbitrary>], iteration_bounds = array<i64: 8, 1>, scalar_prefetch = 0 : i64, scratch_operands = 1 : i64, tpu.core_type = #tpu.core_type<tc>, window_params = [{transform_indices = @transform_0, window_bounds = array<i64: 1, 16, 16>}, {transform_indices = @transform_1, window_bounds = array<i64: 16, 16>}, {pipeline_mode = #tpu.pipeline_mode<synchronous>, transform_indices = @transform_2, window_bounds = array<i64: 16, 16>}, {transform_indices = @transform_3, window_bounds = array<i64: 1, 16, 16>}, {pipeline_mode = #tpu.pipeline_mode<synchronous>, transform_indices = @transform_4, window_bounds = array<i64: 1, 1>}]} {
    %c0_i32 = arith.constant 0 : i32
    %0 = arith.cmpi eq, %arg0, %c0_i32 : i32
    %c0_i32_0 = arith.constant 0 : i32
    %1 = arith.cmpi eq, %arg1, %c0_i32_0 : i32
    %2 = arith.andi %0, %1 : i1
    %c7_i32 = arith.constant 7 : i32
    %3 = arith.cmpi eq, %arg0, %c7_i32 : i32
    %c0_i32_1 = arith.constant 0 : i32
    %4 = arith.cmpi eq, %arg1, %c0_i32_1 : i32
    %5 = arith.andi %3, %4 : i1
    %6 = arith.extui %2 : i1 to i32
    %c0_i32_2 = arith.constant 0 : i32
    %7 = arith.cmpi ne, %6, %c0_i32_2 : i32
    scf.if %7 {
      %cst_21 = arith.constant 0.000000e+00 : f32
      %33 = vector.broadcast %cst_21 : f32 to vector<16x16xf32>
      %c0_22 = arith.constant 0 : index
      %c0_23 = arith.constant 0 : index
      %34 = vector.load %arg7[%c0_22, %c0_23] : memref<16x16xf32, #tpu.memory_space<vmem>>, vector<16x16xf32>
      tpu.vector_store %arg7[%c0_22, %c0_23], %33 {strides = array<i32>} : memref<16x16xf32, #tpu.memory_space<vmem>>, vector<16x16xf32>,
    } else {
    }
    %c0 = arith.constant 0 : index
    %c0_3 = arith.constant 0 : index
    %c0_4 = arith.constant 0 : index
    %8 = vector.load %arg2[%c0, %c0_3, %c0_4] : memref<1x16x16xf32, #tpu.memory_space<vmem>>, vector<1x16x16xf32>
    %9 = vector.shape_cast %8 : vector<1x16x16xf32> to vector<16x16xf32>
    %c0_5 = arith.constant 0 : index
    %c0_6 = arith.constant 0 : index
    %10 = vector.load %arg3[%c0_5, %c0_6] : memref<16x16xf32, #tpu.memory_space<vmem>>, vector<16x16xf32>
    %cst = arith.constant dense<0.000000e+00> : vector<16x16xf32>
    %11 = tpu.matmul %10, %9, %cst {dimension_numbers = #tpu.dot_dimension_numbers<[1], [0], [0], [1], [0, 0, 1, 1], [], []>} : vector<16x16xf32>, vector<16x16xf32>, vector<16x16xf32> -> vector<16x16xf32>
    %c0_7 = arith.constant 0 : index
    %c0_8 = arith.constant 0 : index
    %12 = vector.load %arg4[%c0_7, %c0_8] : memref<16x16xf32, #tpu.memory_space<vmem>>, vector<16x16xf32>
    %cst_9 = arith.constant dense<0.000000e+00> : vector<16x16xf32>
    %13 = tpu.matmul %11, %12, %cst_9 {dimension_numbers = #tpu.dot_dimension_numbers<[1], [0], [0], [1], [0, 0, 1, 1], [], []>} : vector<16x16xf32>, vector<16x16xf32>, vector<16x16xf32> -> vector<16x16xf32>
    %c0_10 = arith.constant 0 : index
    %c0_11 = arith.constant 0 : index
    %c0_12 = arith.constant 0 : index
    %14 = vector.load %arg5[%c0_10, %c0_11, %c0_12] : memref<1x16x16xf32, #tpu.memory_space<vmem>>, vector<1x16x16xf32>
    %15 = vector.shape_cast %14 : vector<1x16x16xf32> to vector<16x16xf32>
    %cst_13 = arith.constant 0.000000e+00 : f32
    %16 = vector.broadcast %cst_13 : f32 to vector<16x16xf32>
    %17 = arith.maximumf %13, %16 : vector<16x16xf32>
    %18 = arith.mulf %13, %15 : vector<16x16xf32>
    %19 = arith.subf %17, %18 : vector<16x16xf32>
    %20 = math.absf %13 : vector<16x16xf32>
    %cst_14 = arith.constant 0.000000e+00 : f32
    %21 = vector.broadcast %cst_14 : f32 to vector<16x16xf32>
    %22 = arith.subf %21, %20 : vector<16x16xf32>
    %23 = math.exp %22 : vector<16x16xf32>
    %cst_15 = arith.constant 1.000000e+00 : f32
    %24 = vector.broadcast %cst_15 : f32 to vector<16x16xf32>
    %25 = arith.addf %24, %23 : vector<16x16xf32>
    %26 = math.log %25 : vector<16x16xf32>
    %27 = arith.addf %19, %26 : vector<16x16xf32>
    %c0_16 = arith.constant 0 : index
    %c0_17 = arith.constant 0 : index
    %28 = vector.load %arg7[%c0_16, %c0_17] : memref<16x16xf32, #tpu.memory_space<vmem>>, vector<16x16xf32>
    %29 = arith.addf %28, %27 : vector<16x16xf32>
    %c0_18 = arith.constant 0 : index
    %c0_19 = arith.constant 0 : index
    %30 = vector.load %arg7[%c0_18, %c0_19] : memref<16x16xf32, #tpu.memory_space<vmem>>, vector<16x16xf32>
    tpu.vector_store %arg7[%c0_18, %c0_19], %29 {strides = array<i32>} : memref<16x16xf32, #tpu.memory_space<vmem>>, vector<16x16xf32>,
    %31 = arith.extui %5 : i1 to i32
    %c0_i32_20 = arith.constant 0 : i32
    %32 = arith.cmpi ne, %31, %c0_i32_20 : i32
    scf.if %32 {
      %c0_21 = arith.constant 0 : index
      %c0_22 = arith.constant 0 : index
      %33 = vector.load %arg7[%c0_21, %c0_22] : memref<16x16xf32, #tpu.memory_space<vmem>>, vector<16x16xf32>
      %34 = vector.shape_cast %33 : vector<16x16xf32> to vector<1x16x16xf32>
      %cst_23 = arith.constant dense<0.000000e+00> : vector<1xf32>
      %35 = vector.multi_reduction <add>, %34, %cst_23 [1, 2] : vector<1x16x16xf32> to vector<1xf32>
      %36 = vector.shape_cast %35 : vector<1xf32> to vector<1x1x1xf32>
      %37 = vector.extract %36[0, 0, 0] : f32 from vector<1x1x1xf32>
      %38 = vector.broadcast %37 : f32 to vector<1x1xf32>
      %c0_24 = arith.constant 0 : index
      %c0_25 = arith.constant 0 : index
      %39 = vector.load %arg6[%c0_24, %c0_25] : memref<1x1xf32, #tpu.memory_space<vmem>>, vector<1x1xf32>
      tpu.vector_store %arg6[%c0_24, %c0_25], %38 {strides = array<i32>} : memref<1x1xf32, #tpu.memory_space<vmem>>, vector<1x1xf32>,
    } else {
    }
    return
  }
  func.func @transform_0(%arg0: i32, %arg1: i32) -> (i32, i32, i32) {
    %c0_i32 = arith.constant 0 : i32
    %c0_i32_0 = arith.constant 0 : i32
    %c0_i32_1 = arith.constant 0 : i32
    return %arg0, %c0_i32, %c0_i32_0 : i32, i32, i32
  }
  func.func @transform_1(%arg0: i32, %arg1: i32) -> (i32, i32) {
    %c0_i32 = arith.constant 0 : i32
    %c0_i32_0 = arith.constant 0 : i32
    return %arg1, %c0_i32 : i32, i32
  }
  func.func @transform_2(%arg0: i32, %arg1: i32) -> (i32, i32) {
    %c0_i32 = arith.constant 0 : i32
    %c0_i32_0 = arith.constant 0 : i32
    %c0_i32_1 = arith.constant 0 : i32
    return %c0_i32, %c0_i32_0 : i32, i32
  }
  func.func @transform_3(%arg0: i32, %arg1: i32) -> (i32, i32, i32) {
    %c0_i32 = arith.constant 0 : i32
    %c0_i32_0 = arith.constant 0 : i32
    return %arg0, %arg1, %c0_i32 : i32, i32, i32
  }
  func.func @transform_4(%arg0: i32, %arg1: i32) -> (i32, i32) {
    %c0_i32 = arith.constant 0 : i32
    %c0_i32_0 = arith.constant 0 : i32
    %c0_i32_1 = arith.constant 0 : i32
    return %c0_i32, %c0_i32_0 : i32, i32
  }
}

</mosaic_0001>

<llo_original>
// kernel: criterion_dsn.2
$region0: #{criterion_dsn.2}
  #allocation0 [shape = 'u32[]', space=smem, size = 0x4, offset = 0x4, fixed_abs, tag = 'smem constant byte address 0x4 - core index']
  #allocation1 [shape = 'u32[72,128]{1,0:T(1,128)}', space=vmem, size = 0x9000, scoped, tag = 'internal scratch']
  #allocation2 [shape = 'f32[16,16]{1,0:T(8,128)}', space=vmem, size = 0x2000, scoped, tag = 'scratch operand']
  %s0 = inlined_call_operand.hbm [shape: f32[8,8,8], index: 0, kind: input, shape index: {}]
  %s1 = inlined_call_operand.hbm [shape: f32[16,8], index: 1, kind: input, shape index: {}]
  %s2 = inlined_call_operand.vmem [shape: f32[8,16], index: 2, kind: input, shape index: {}]
  %s3 = inlined_call_operand.hbm [shape: f32[8,16,16], index: 3, kind: input, shape index: {}]
  %s4 = inlined_call_operand.hbm [shape: f32[1,1], index: 4, kind: output, shape index: {}]
  %s5 = sld [smem:[#allocation0]]
  $region69: #{criterion_dsn.2} parent=0
    _
  %s7 = ssub.s32 1, %s5
  %s8 = scalar_select 0, %s7, %s5
  $region1: #{criterion_dsn.2} parent=0
    #allocation3 [shape = 'u8[8192]{0}', space=vmem, size = 0x2000, scoped, tag = 'input window, operand 0']
    #allocation4 [shape = 's32[2]{0}', space=sflag, size = 0x8, scoped, tag = 'scoped memory for criterion_dsn.2']
    #allocation5 [shape = 's32[2]{0}', space=sflag, size = 0x8, scoped, tag = 'scoped memory for criterion_dsn.2']
    #allocation6 [shape = 'u8[8192]{0}', space=vmem, size = 0x2000, scoped, tag = 'input window, operand 1, single buffered']
    #allocation7 [shape = 's32[1]{0}', space=sflag, size = 0x4, scoped, tag = 'scoped memory for criterion_dsn.2']
    #allocation8 [shape = 'u8[16384]{0}', space=vmem, size = 0x4000, scoped, tag = 'input window, operand 3']
    #allocation9 [shape = 'u8[512]{0}', space=vmem, size = 0x400, scoped, tag = 'output window, operand 0, single buffered']
    %9 = vsyncpa [#allocation4], 0
    %s10 = scalar_lea.sflag [#allocation4], 1
    %11 = vsyncpa %s10, 0
    %12 = vsyncpa [#allocation7], 0
    %13 = vsyncpa [#allocation5], 0
    loop: start=0, step=1, limit=10
    $region2: #{criterion_dsn.2} parent=1 // loop_pre_header
      _
    $region3: #{criterion_dsn.2} parent=1 // loop_header
      %s15 = sphi 0, %s19
      %p16 = scmp.ge.s32.totalorder %s15, 10
      %s22 = sphi 0, %s34
      %s23 = sphi 0, %s30
      %s24 = sphi 0, %s22
      %s25 = sphi 0, %s23
      %s26 = sphi 0, %s24
      %s27 = sphi 0, %s25
      %s37 = sphi 0, %s39
      %s40 = sphi 0, %s37
      %s41 = sphi 0, %s40
      %s57 = sphi 0, %s41
      %s63 = sphi 0, %s65
      %s66 = sphi 0, %s63
      %s67 = sphi 0, %s66
      %s83 = sphi 0, %s67
      %s87 = sphi 0, %s87
      %s89 = sphi 0, %s87
      %s90 = sphi 0, %s89
      %s104 = sphi 0, %s90
      %s112 = sphi 0, %s114
      %s115 = sphi 0, %s112
      %s116 = sphi 0, %s115
      %s132 = sphi 0, %s116
      %s136 = sphi 0, %s136
      %s138 = sphi 0, %s136
      %s139 = sphi 0, %s138
      %s153 = sphi 0, %s139
    $region4: #{criterion_dsn.2} parent=1 // loop_header_branch
      %18 = sbr.rel (%p16) target = $region8
    $region5: #{criterion_dsn.2} parent=1 // loop_body
      %s20 = ssub.s32 %s15, 1
      %s21 = ssub.s32 %s15, 2
      %s28 = sadd.s32 1, %s23
      %p29 = scmp.ge.s32.totalorder %s28, 1
      %s30 = scalar_select %p29, 0, %s28
      %s31 = sadd.s32 1, %s22
      %s32 = scalar_select %p29, %s31, %s22
      %p33 = scmp.ge.s32.totalorder %s32, 8
      %s34 = scalar_select %p33, 0, %s32
      %s35 = ssub.s32 %s22, %s34
      %p36 = scmp.eq.s32.totalorder %s35, 0
      %s38 = sadd.s32 %s37, 1
      %s39 = scalar_select %p36, %s37, %s38
      %p42 = pneg %p36
      %p43 = scmp.eq.s32.totalorder %s15, 7
      %p44 = por %p42, %p43
      %p45 = scmp.ne.s32.totalorder %s37, %s40
      %p46 = scmp.eq.s32.totalorder %s15, 0
      %p47 = por %p45, %p46
      %p48 = scmp.ne.s32.totalorder %s37, %s40
      %p49 = scmp.eq.s32.totalorder %s20, 7
      %p50 = por %p48, %p49
      %p51 = scmp.ne.s32.totalorder %s40, %s41
      %p52 = scmp.eq.s32.totalorder %s20, 0
      %p53 = por %p51, %p52
      %p54 = scmp.ne.s32.totalorder %s40, %s41
      %p55 = scmp.eq.s32.totalorder %s21, 7
      %p56 = por %p54, %p55
      %p58 = scmp.ne.s32.totalorder %s41, %s57
      %p59 = scmp.eq.s32.totalorder %s21, 0
      %p60 = por %p58, %p59
      %s61 = ssub.s32 %s23, %s30
      %p62 = scmp.eq.s32.totalorder %s61, 0
      %s64 = sadd.s32 %s63, 1
      %s65 = scalar_select %p62, %s63, %s64
      %p68 = pneg %p62
      %p69 = scmp.eq.s32.totalorder %s15, 7
      %p70 = por %p68, %p69
      %p71 = scmp.ne.s32.totalorder %s63, %s66
      %p72 = scmp.eq.s32.totalorder %s15, 0
      %p73 = por %p71, %p72
      %p74 = scmp.ne.s32.totalorder %s63, %s66
      %p75 = scmp.eq.s32.totalorder %s20, 7
      %p76 = por %p74, %p75
      %p77 = scmp.ne.s32.totalorder %s66, %s67
      %p78 = scmp.eq.s32.totalorder %s20, 0
      %p79 = por %p77, %p78
      %p80 = scmp.ne.s32.totalorder %s66, %s67
      %p81 = scmp.eq.s32.totalorder %s21, 7
      %p82 = por %p80, %p81
      %p84 = scmp.ne.s32.totalorder %s67, %s83
      %p85 = scmp.eq.s32.totalorder %s21, 0
      %p86 = por %p84, %p85
      %s88 = sadd.s32 %s87, 1
      %p91 = scmp.eq.s32.totalorder %s15, 7
      %p92 = scmp.ne.s32.totalorder %s87, %s89
      %p93 = scmp.eq.s32.totalorder %s15, 0
      %p94 = por %p92, %p93
      %p95 = scmp.ne.s32.totalorder %s87, %s89
      %p96 = scmp.eq.s32.totalorder %s20, 7
      %p97 = por %p95, %p96
      %p98 = scmp.ne.s32.totalorder %s89, %s90
      %p99 = scmp.eq.s32.totalorder %s20, 0
      %p100 = por %p98, %p99
      %p101 = scmp.ne.s32.totalorder %s89, %s90
      %p102 = scmp.eq.s32.totalorder %s21, 7
      %p103 = por %p101, %p102
      %p105 = scmp.ne.s32.totalorder %s90, %s104
      %p106 = scmp.eq.s32.totalorder %s21, 0
      %p107 = por %p105, %p106
      %s108 = ssub.s32 %s22, %s34
      %s109 = ssub.s32 %s23, %s30
      %s110 = sor.u32 %s108, %s109
      %p111 = scmp.eq.s32.totalorder %s110, 0
      %s113 = sadd.s32 %s112, 1
      %s114 = scalar_select %p111, %s112, %s113
      %p117 = pneg %p111
      %p118 = scmp.eq.s32.totalorder %s15, 7
      %p119 = por %p117, %p118
      %p120 = scmp.ne.s32.totalorder %s112, %s115
      %p121 = scmp.eq.s32.totalorder %s15, 0
      %p122 = por %p120, %p121
      %p123 = scmp.ne.s32.totalorder %s112, %s115
      %p124 = scmp.eq.s32.totalorder %s20, 7
      %p125 = por %p123, %p124
      %p126 = scmp.ne.s32.totalorder %s115, %s116
      %p127 = scmp.eq.s32.totalorder %s20, 0
      %p128 = por %p126, %p127
      %p129 = scmp.ne.s32.totalorder %s115, %s116
      %p130 = scmp.eq.s32.totalorder %s21, 7
      %p131 = por %p129, %p130
      %p133 = scmp.ne.s32.totalorder %s116, %s132
      %p134 = scmp.eq.s32.totalorder %s21, 0
      %p135 = por %p133, %p134
      %s137 = sadd.s32 %s136, 1
      %p140 = scmp.eq.s32.totalorder %s15, 7
      %p141 = scmp.ne.s32.totalorder %s136, %s138
      %p142 = scmp.eq.s32.totalorder %s15, 0
      %p143 = por %p141, %p142
      %p144 = scmp.ne.s32.totalorder %s136, %s138
      %p145 = scmp.eq.s32.totalorder %s20, 7
      %p146 = por %p144, %p145
      %p147 = scmp.ne.s32.totalorder %s138, %s139
      %p148 = scmp.eq.s32.totalorder %s20, 0
      %p149 = por %p147, %p148
      %p150 = scmp.ne.s32.totalorder %s138, %s139
      %p151 = scmp.eq.s32.totalorder %s21, 7
      %p152 = por %p150, %p151
      %p154 = scmp.ne.s32.totalorder %s139, %s153
      %p155 = scmp.eq.s32.totalorder %s21, 0
      %p156 = por %p154, %p155
      %p157 = scmp.le.s32.totalorder 1, %s15
      %p158 = scmp.lt.s32.totalorder %s15, 9
      %p159 = pnand %p157, %p158
      %p160 = pneg %p159
      // Predicated region
      $region9: #{criterion_dsn.2} parent=5 // pred_check
        _
      $region10: #{criterion_dsn.2} parent=5 // pred_check_branch
        %162 = sbr.rel (%p159) target = $region12
      $region11: #{criterion_dsn.2} parent=5 // pred_region
        %s163 = ssub.s32 %s15, 1
        // Predicated region
        $region13: #{criterion_dsn.2} parent=11 // pred_check
          %p164 = pneg %p79
        $region14: #{criterion_dsn.2} parent=11 // pred_check_branch
          %166 = sbr.rel (%p164) target = $region16
        $region15: #{criterion_dsn.2} parent=11 // pred_region
          %s167 = smul.u32 2, %s25
          %169 = vsyncadd [#allocation7], 0
          %s170 = smul.addr %s167, 8
          %s171 = scalar_lea.hbm %s1, %s170
          %s172 = sshll.u32 %s171, 4
          %s173 = int_to_ptr.hbm [resolvable:$true] %s172
          %s174 = sshll.u32 [#allocation6], 4
          %s175 = int_to_ptr.vmem [resolvable:$true] %s174
          %180 = dma.hbm_to_vmem [thread:$0]  %s173, 256, %s175, [#allocation7], 128, 128, 8
        $region16: #{criterion_dsn.2} parent=11 // pred_fallthru
          _
        // Predicated region
        $region17: #{criterion_dsn.2} parent=11 // pred_check
          %p181 = pneg %p100
        $region18: #{criterion_dsn.2} parent=11 // pred_check_branch
          %183 = sbr.rel (%p181) target = $region20
        $region19: #{criterion_dsn.2} parent=11 // pred_region
          _
        $region20: #{criterion_dsn.2} parent=11 // pred_fallthru
          _
      $region12: #{criterion_dsn.2} parent=5 // pred_fallthru
        _
      %p184 = scmp.lt.s32.totalorder %s15, 8
      // Predicated region
      $region21: #{criterion_dsn.2} parent=5 // pred_check
        %p185 = pneg %p184
      $region22: #{criterion_dsn.2} parent=5 // pred_check_branch
        %187 = sbr.rel (%p185) target = $region24
      $region23: #{criterion_dsn.2} parent=5 // pred_region
        // Predicated region
        $region25: #{criterion_dsn.2} parent=23 // pred_check
          %p188 = pneg %p47
        $region26: #{criterion_dsn.2} parent=23 // pred_check_branch
          %190 = sbr.rel (%p188) target = $region28
        $region27: #{criterion_dsn.2} parent=23 // pred_region
          %s191 = sand.u32 %s15, 1
          %s192 = scalar_lea.sflag [#allocation4], %s191
          %s193 = sand.u32 %s37, 1
          %s194 = smul.addr %s193, 8
          %s195 = scalar_lea.vmem [#allocation3], %s194
          %197 = vsyncadd %s192, 0
          %s198 = smul.addr %s22, 8
          %s199 = scalar_lea.hbm %s0, %s198
          %s201 = sshll.u32 %s199, 4
          %s202 = int_to_ptr.hbm [resolvable:$true] %s201
          %s203 = sshll.u32 %s195, 4
          %s204 = int_to_ptr.vmem [resolvable:$true] %s203
          %206 = dma.hbm_to_vmem [thread:$0]  %s202, 128, %s204, %s192
        $region28: #{criterion_dsn.2} parent=23 // pred_fallthru
          _
        // Predicated region
        $region29: #{criterion_dsn.2} parent=23 // pred_check
          %p207 = pneg %p122
        $region30: #{criterion_dsn.2} parent=23 // pred_check_branch
          %209 = sbr.rel (%p207) target = $region32
        $region31: #{criterion_dsn.2} parent=23 // pred_region
          %s210 = sand.u32 %s15, 1
          %s211 = scalar_lea.sflag [#allocation4], %s210
          %s212 = sand.u32 %s112, 1
          %s213 = smul.addr %s212, 16
          %s214 = scalar_lea.vmem [#allocation8], %s213
          %s215 = smul.u32 2, %s23
          %217 = vsyncadd %s211, 0
          %s218 = smul.addr %s22, 2
          %s219 = sadd.s32 %s215, %s218
          %s220 = smul.addr %s219, 8
          %s221 = scalar_lea.hbm %s3, %s220
          %s222 = sshll.u32 %s221, 4
          %s223 = int_to_ptr.hbm [resolvable:$true] %s222
          %s224 = sshll.u32 %s214, 4
          %s225 = int_to_ptr.vmem [resolvable:$true] %s224
          %230 = dma.hbm_to_vmem [thread:$0]  %s223, 256, %s225, %s211, 128, 128, 8
        $region32: #{criterion_dsn.2} parent=23 // pred_fallthru
          _
      $region24: #{criterion_dsn.2} parent=5 // pred_fallthru
        _
      %p231 = scmp.le.s32.totalorder 1, %s15
      %p232 = scmp.lt.s32.totalorder %s15, 9
      %p233 = pnand %p231, %p232
      %p234 = pneg %p233
      // Predicated region
      $region33: #{criterion_dsn.2} parent=5 // pred_check
        _
      $region34: #{criterion_dsn.2} parent=5 // pred_check_branch
        %236 = sbr.rel (%p233) target = $region36
      $region35: #{criterion_dsn.2} parent=5 // pred_region
        %s237 = ssub.s32 %s15, 1
        %s238 = sand.u32 %s20, 1
        %s239 = scalar_lea.sflag [#allocation4], %s238
        %s240 = sand.u32 %s40, 1
        %s241 = smul.addr %s240, 8
        %s242 = scalar_lea.vmem [#allocation3], %s241
        // Predicated region
        $region37: #{criterion_dsn.2} parent=35 // pred_check
          %p243 = pneg %p53
        $region38: #{criterion_dsn.2} parent=35 // pred_check_branch
          %245 = sbr.rel (%p243) target = $region40
        $region39: #{criterion_dsn.2} parent=35 // pred_region
          %247 = dma.done %s239, 128
        $region40: #{criterion_dsn.2} parent=35 // pred_fallthru
          _
        // Predicated region
        $region41: #{criterion_dsn.2} parent=35 // pred_check
          %p248 = pneg %p79
        $region42: #{criterion_dsn.2} parent=35 // pred_check_branch
          %250 = sbr.rel (%p248) target = $region44
        $region43: #{criterion_dsn.2} parent=35 // pred_region
          %252 = dma.done [#allocation7], 256
        $region44: #{criterion_dsn.2} parent=35 // pred_fallthru
          _
        %s253 = sand.u32 %s20, 1
        %s254 = scalar_lea.sflag [#allocation4], %s253
        %s255 = sand.u32 %s115, 1
        %s256 = smul.addr %s255, 16
        %s257 = scalar_lea.vmem [#allocation8], %s256
        // Predicated region
        $region45: #{criterion_dsn.2} parent=35 // pred_check
          %p258 = pneg %p128
        $region46: #{criterion_dsn.2} parent=35 // pred_check_branch
          %260 = sbr.rel (%p258) target = $region48
        $region47: #{criterion_dsn.2} parent=35 // pred_region
          %262 = dma.done %s254, 256
        $region48: #{criterion_dsn.2} parent=35 // pred_fallthru
          _
        %s263 = sand.u32 %s20, 1
        %s264 = scalar_lea.sflag [#allocation4], %s263
        %s265 = sand.u32 %s40, 1
        %s266 = smul.addr %s265, 8
        %s267 = scalar_lea.vmem [#allocation3], %s266
        %p268 = pneg %p53
        %p269 = pneg %p50
        %p270 = pneg %p79
        %p271 = pneg %p76
        %p272 = pneg %p100
        %p273 = pneg %p97
        %s274 = sand.u32 %s20, 1
        %s275 = scalar_lea.sflag [#allocation4], %s274
        %s276 = sand.u32 %s115, 1
        %s277 = smul.addr %s276, 16
        %s278 = scalar_lea.vmem [#allocation8], %s277
        %p279 = pneg %p128
        %p280 = pneg %p125
        %p281 = pneg %p149
        %p282 = pneg %p146
        %s283 = smul.u32 2, %s25
        %s284 = smul.u32 2, %s25
        %p285 = scmp.eq.s32.totalorder %s24, 0
        %p286 = scmp.eq.s32.totalorder %s25, 0
        %p287 = pnand %p285, %p286
        %p288 = pneg %p287
        %p289 = scmp.eq.s32.totalorder %s24, 7
        %p290 = pnand %p289, %p286
        %p291 = pneg %p290
        // Predicated region
        $region49: #{criterion_dsn.2} parent=35 // pred_check
          _
        $region50: #{criterion_dsn.2} parent=35 // pred_check_branch
          %293 = sbr.rel (%p287) target = $region52
        $region51: #{criterion_dsn.2} parent=35 // pred_region
          %vm294 = vcmask 130048
          %295 = vst.msk [vmem:[#allocation2] sm:$0xff] %vm294, 0.0
          %296 = vst.msk [vmem:[#allocation2 + $0x8] sm:$0xff] %vm294, 0.0
        $region52: #{criterion_dsn.2} parent=35 // pred_fallthru
          _
        %v297 = vld [vmem:[%s242] sm:$0xff]
        %v298 = vld [vmem:[#allocation6] sm:$0xff]
        %v299 = vld [vmem:[#allocation6 + $0x8] sm:$0xff]
        %vm300 = vcmask 64512
        %v302 = vsel %vm300, %v298, 0
        %v305 = vsel %vm300, %v299, 0
        %307 = vmatpush.msra.mxu0 0.0
        %308 = vmatpush.msra.mxu0 0.0
        %309 = vmatpush.msra.mxu0 0.0
        %310 = vmatpush.msra.mxu0 0.0
        %311 = vmatpush.msra.mxu0 0.0
        %312 = vmatpush.msra.mxu0 0.0
        %313 = vmatpush.msra.mxu0 0.0
        %314 = vmatpush.msra.mxu0 0.0
        %315 = vmatpush.msra.mxu0 0.0
        %316 = vmatpush.msra.mxu0 0.0
        %317 = vmatpush.msra.mxu0 0.0
        %318 = vmatpush.msra.mxu0 0.0
        %319 = vmatpush.msra.mxu0 0.0
        %320 = vmatpush.msra.mxu0 0.0
        %321 = vmatpush.msra.mxu0 0.0
        %322 = vmatpush.msra.mxu0 %v297
        %323 = vmatmul.f32.gmra.mxu0 %v302
        %v324 = vpop.f32.mrf.mxu0
        %v325 = vadd.f32 0.0, %v324
        %326 = vmatmul.f32.gmra.mxu0 %v305
        %v327 = vpop.f32.mrf.mxu0
        %v328 = vadd.f32 0.0, %v327
        %329 = vdwg.mxu0
        %v330 = vld [vmem:[%s2] sm:$0xff]
        %v332 = vsel %vm300, %v325, 0
        %v335 = vsel %vm300, %v328, 0
        %337 = vmatpush.msra.mxu0 0.0
        %338 = vmatpush.msra.mxu0 0.0
        %339 = vmatpush.msra.mxu0 0.0
        %340 = vmatpush.msra.mxu0 0.0
        %341 = vmatpush.msra.mxu0 0.0
        %342 = vmatpush.msra.mxu0 0.0
        %343 = vmatpush.msra.mxu0 0.0
        %344 = vmatpush.msra.mxu0 0.0
        %345 = vmatpush.msra.mxu0 0.0
        %346 = vmatpush.msra.mxu0 0.0
        %347 = vmatpush.msra.mxu0 0.0
        %348 = vmatpush.msra.mxu0 0.0
        %349 = vmatpush.msra.mxu0 0.0
        %350 = vmatpush.msra.mxu0 0.0
        %351 = vmatpush.msra.mxu0 0.0
        %352 = vmatpush.msra.mxu0 %v330
        %353 = vmatmul.f32.gmra.mxu0 %v332
        %v354 = vpop.f32.mrf.mxu0
        %v355 = vadd.f32 0.0, %v354
        %356 = vmatmul.f32.gmra.mxu0 %v335
        %v357 = vpop.f32.mrf.mxu0
        %v358 = vadd.f32 0.0, %v357
        %359 = vdwg.mxu0
        %v360 = vld [vmem:[%s257] sm:$0xff]
        %v361 = vld [vmem:[%s257 + $0x8] sm:$0xff]
        %v362 = vmax.f32 %v355, 0.0
        %v363 = vmax.f32 %v358, 0.0
        %v364 = vmul.f32 %v355, %v360
        %v365 = vmul.f32 %v358, %v361
        %v366 = vsub.f32 %v362, %v364
        %v367 = vsub.f32 %v363, %v365
        %v368 = vand.u32 2147483647, %v355
        %v369 = vand.u32 2147483647, %v358
        %v370 = vsub.f32 0.0, %v368
        %v371 = vsub.f32 0.0, %v369
        %v372 = vmul.f32 %v370, 1.442695
        %v373 = vpow.pop %v372
        %v374 = vmul.f32 %v371, 1.442695
        %v375 = vpow.pop %v374
        %v376 = vadd.f32 %v373, 1.0
        %v377 = vadd.f32 %v375, 1.0
        %v378 = vlog2.pop %v376
        %v379 = vmul.f32 %v378, 0.6931472
        %v380 = vlog2.pop %v377
        %v381 = vmul.f32 %v380, 0.6931472
        %v382 = vadd.f32 %v366, %v379
        %v383 = vadd.f32 %v367, %v381
        %v384 = vld [vmem:[#allocation2] sm:$0xff]
        %v385 = vld [vmem:[#allocation2 + $0x8] sm:$0xff]
        %v386 = vadd.f32 %v384, %v382
        %v387 = vadd.f32 %v385, %v383
        %vm388 = vcmask 130048
        %389 = vst.msk [vmem:[#allocation2] sm:$0xff] %vm388, %v386
        %390 = vst.msk [vmem:[#allocation2 + $0x8] sm:$0xff] %vm388, %v387
        // Predicated region
        $region53: #{criterion_dsn.2} parent=35 // pred_check
          _
        $region54: #{criterion_dsn.2} parent=35 // pred_check_branch
          %392 = sbr.rel (%p290) target = $region56
        $region55: #{criterion_dsn.2} parent=35 // pred_region
          %v393 = vld [vmem:[#allocation2] sm:$0xff]
          %v394 = vld [vmem:[#allocation2 + $0x8] sm:$0xff]
          %v395 = vsel %vm388, %v393, 0.0
          %v396 = vsel %vm388, %v394, 0.0
          %v397 = vadd.f32 %v395, %v396
          %398 = vadd.xlane.f32.xlu0 %v397
          %v399 = vpop.xlane.xlu0 %398
          %v400 = vrot.slane %v399, 4
          %v401 = vadd.f32 %v399, %v400
          %v402 = vrot.slane %v401, 2
          %v403 = vadd.f32 %v401, %v402
          %v404 = vrot.slane %v403, 1
          %v405 = vadd.f32 %v403, %v404
          %s406 = vtos %v405
          %v407 = vstv %s406
          %vm408 = vcmask 0
          %409 = vst.msk [vmem:[#allocation9] sm:$0x1] %vm408, %v407
        $region56: #{criterion_dsn.2} parent=35 // pred_fallthru
          _
        // Predicated region
        $region57: #{criterion_dsn.2} parent=35 // pred_check
          %p410 = pneg %p146
        $region58: #{criterion_dsn.2} parent=35 // pred_check_branch
          %412 = sbr.rel (%p410) target = $region60
        $region59: #{criterion_dsn.2} parent=35 // pred_region
          %414 = vsyncadd [#allocation5], 0
          %s416 = sshll.u32 [#allocation9], 4
          %s417 = int_to_ptr.vmem [resolvable:$true] %s416
          %s418 = sshll.u32 %s4, 4
          %s419 = int_to_ptr.hbm [resolvable:$true] %s418
          %421 = dma.vmem_to_hbm [thread:$0]  %s417, 16, %s419, [#allocation5]
        $region60: #{criterion_dsn.2} parent=35 // pred_fallthru
          _
        // Predicated region
        $region61: #{criterion_dsn.2} parent=35 // pred_check
          %p422 = pneg %p146
        $region62: #{criterion_dsn.2} parent=35 // pred_check_branch
          %424 = sbr.rel (%p422) target = $region64
        $region63: #{criterion_dsn.2} parent=35 // pred_region
          %426 = dma.done [#allocation5], 16
        $region64: #{criterion_dsn.2} parent=35 // pred_fallthru
          _
      $region36: #{criterion_dsn.2} parent=5 // pred_fallthru
        _
      %p427 = scmp.le.s32.totalorder 2, %s15
      // Predicated region
      $region65: #{criterion_dsn.2} parent=5 // pred_check
        %p428 = pneg %p427
      $region66: #{criterion_dsn.2} parent=5 // pred_check_branch
        %430 = sbr.rel (%p428) target = $region68
      $region67: #{criterion_dsn.2} parent=5 // pred_region
        %s431 = ssub.s32 %s15, 2
      $region68: #{criterion_dsn.2} parent=5 // pred_fallthru
        _
    $region6: #{criterion_dsn.2} parent=1 // loop_footer
      %s19 = sadd.s32 1, %s15
    $region7: #{criterion_dsn.2} parent=1 // loop_footer_branch
      %14 = sbr.rel target = $region3
    $region8: #{criterion_dsn.2} parent=1 // loop_exit
      _
    %432 = vsyncpa [#allocation4], 1
    %s433 = scalar_lea.sflag [#allocation4], 1
    %434 = vsyncpa %s433, 1
    %435 = vsyncpa [#allocation7], 1
    %436 = vsyncpa [#allocation5], 1
    %s437 = scalar_lea.sflag [#allocation5], 1
    %438 = vsyncpa %s437, 1

// kernel: criterion_dsn.3
$region0: #{criterion_dsn.3}
  #allocation0 [shape = 'u32[]', space=smem, size = 0x4, offset = 0x4, fixed_abs, tag = 'smem constant byte address 0x4 - core index']
  #allocation1 [shape = 'u32[72,128]{1,0:T(1,128)}', space=vmem, size = 0x9000, scoped, tag = 'internal scratch']
  #allocation2 [shape = 'f32[16,16]{1,0:T(8,128)}', space=vmem, size = 0x2000, scoped, tag = 'scratch operand']
  %s0 = inlined_call_operand.hbm [shape: f32[8,16,16], index: 0, kind: input, shape index: {}]
  %s1 = inlined_call_operand.hbm [shape: f32[16,16], index: 1, kind: input, shape index: {}, may-alias: {1,2}]
  %s2 = inlined_call_operand.hbm [shape: f32[16,16], index: 2, kind: input, shape index: {}, may-alias: {1,2}]
  %s3 = inlined_call_operand.hbm [shape: f32[8,16,16], index: 3, kind: input, shape index: {}]
  %s4 = inlined_call_operand.hbm [shape: f32[1,1], index: 4, kind: output, shape index: {}]
  %s5 = sld [smem:[#allocation0]]
  $region73: #{criterion_dsn.3} parent=0
    _
  %s7 = ssub.s32 1, %s5
  %s8 = scalar_select 0, %s7, %s5
  $region1: #{criterion_dsn.3} parent=0
    #allocation3 [shape = 'u8[16384]{0}', space=vmem, size = 0x4000, scoped, tag = 'input window, operand 0']
    #allocation4 [shape = 's32[2]{0}', space=sflag, size = 0x8, scoped, tag = 'scoped memory for criterion_dsn.3']
    #allocation5 [shape = 's32[2]{0}', space=sflag, size = 0x8, scoped, tag = 'scoped memory for criterion_dsn.3']
    #allocation6 [shape = 'u8[8192]{0}', space=vmem, size = 0x2000, scoped, tag = 'input window, operand 1, single buffered']
    #allocation7 [shape = 's32[1]{0}', space=sflag, size = 0x4, scoped, tag = 'scoped memory for criterion_dsn.3']
    #allocation8 [shape = 'u8[8192]{0}', space=vmem, size = 0x2000, scoped, tag = 'input window, operand 2, single buffered']
    #allocation9 [shape = 'u8[16384]{0}', space=vmem, size = 0x4000, scoped, tag = 'input window, operand 3']
    #allocation10 [shape = 's32[2]{0}', space=sflag, size = 0x8, scoped, tag = 'scoped memory for criterion_dsn.3']
    #allocation11 [shape = 'u8[512]{0}', space=vmem, size = 0x400, scoped, tag = 'output window, operand 0, single buffered']
    %9 = vsyncpa [#allocation4], 0
    %s10 = scalar_lea.sflag [#allocation4], 1
    %11 = vsyncpa %s10, 0
    %12 = vsyncpa [#allocation7], 0
    %13 = vsyncpa [#allocation10], 0
    %s14 = scalar_lea.sflag [#allocation10], 1
    %15 = vsyncpa %s14, 0
    %16 = vsyncpa [#allocation5], 0
    loop: start=0, step=1, limit=10
    $region2: #{criterion_dsn.3} parent=1 // loop_pre_header
      _
    $region3: #{criterion_dsn.3} parent=1 // loop_header
      %s18 = sphi 0, %s22
      %p19 = scmp.ge.s32.totalorder %s18, 10
      %s25 = sphi 0, %s37
      %s26 = sphi 0, %s33
      %s27 = sphi 0, %s25
      %s28 = sphi 0, %s26
      %s29 = sphi 0, %s27
      %s30 = sphi 0, %s28
      %s40 = sphi 0, %s42
      %s43 = sphi 0, %s40
      %s44 = sphi 0, %s43
      %s60 = sphi 0, %s44
      %s66 = sphi 0, %s68
      %s69 = sphi 0, %s66
      %s70 = sphi 0, %s69
      %s86 = sphi 0, %s70
      %s90 = sphi 0, %s90
      %s92 = sphi 0, %s90
      %s93 = sphi 0, %s92
      %s107 = sphi 0, %s93
      %s115 = sphi 0, %s117
      %s118 = sphi 0, %s115
      %s119 = sphi 0, %s118
      %s135 = sphi 0, %s119
      %s139 = sphi 0, %s139
      %s141 = sphi 0, %s139
      %s142 = sphi 0, %s141
      %s156 = sphi 0, %s142
    $region4: #{criterion_dsn.3} parent=1 // loop_header_branch
      %21 = sbr.rel (%p19) target = $region8
    $region5: #{criterion_dsn.3} parent=1 // loop_body
      %s23 = ssub.s32 %s18, 1
      %s24 = ssub.s32 %s18, 2
      %s31 = sadd.s32 1, %s26
      %p32 = scmp.ge.s32.totalorder %s31, 1
      %s33 = scalar_select %p32, 0, %s31
      %s34 = sadd.s32 1, %s25
      %s35 = scalar_select %p32, %s34, %s25
      %p36 = scmp.ge.s32.totalorder %s35, 8
      %s37 = scalar_select %p36, 0, %s35
      %s38 = ssub.s32 %s25, %s37
      %p39 = scmp.eq.s32.totalorder %s38, 0
      %s41 = sadd.s32 %s40, 1
      %s42 = scalar_select %p39, %s40, %s41
      %p45 = pneg %p39
      %p46 = scmp.eq.s32.totalorder %s18, 7
      %p47 = por %p45, %p46
      %p48 = scmp.ne.s32.totalorder %s40, %s43
      %p49 = scmp.eq.s32.totalorder %s18, 0
      %p50 = por %p48, %p49
      %p51 = scmp.ne.s32.totalorder %s40, %s43
      %p52 = scmp.eq.s32.totalorder %s23, 7
      %p53 = por %p51, %p52
      %p54 = scmp.ne.s32.totalorder %s43, %s44
      %p55 = scmp.eq.s32.totalorder %s23, 0
      %p56 = por %p54, %p55
      %p57 = scmp.ne.s32.totalorder %s43, %s44
      %p58 = scmp.eq.s32.totalorder %s24, 7
      %p59 = por %p57, %p58
      %p61 = scmp.ne.s32.totalorder %s44, %s60
      %p62 = scmp.eq.s32.totalorder %s24, 0
      %p63 = por %p61, %p62
      %s64 = ssub.s32 %s26, %s33
      %p65 = scmp.eq.s32.totalorder %s64, 0
      %s67 = sadd.s32 %s66, 1
      %s68 = scalar_select %p65, %s66, %s67
      %p71 = pneg %p65
      %p72 = scmp.eq.s32.totalorder %s18, 7
      %p73 = por %p71, %p72
      %p74 = scmp.ne.s32.totalorder %s66, %s69
      %p75 = scmp.eq.s32.totalorder %s18, 0
      %p76 = por %p74, %p75
      %p77 = scmp.ne.s32.totalorder %s66, %s69
      %p78 = scmp.eq.s32.totalorder %s23, 7
      %p79 = por %p77, %p78
      %p80 = scmp.ne.s32.totalorder %s69, %s70
      %p81 = scmp.eq.s32.totalorder %s23, 0
      %p82 = por %p80, %p81
      %p83 = scmp.ne.s32.totalorder %s69, %s70
      %p84 = scmp.eq.s32.totalorder %s24, 7
      %p85 = por %p83, %p84
      %p87 = scmp.ne.s32.totalorder %s70, %s86
      %p88 = scmp.eq.s32.totalorder %s24, 0
      %p89 = por %p87, %p88
      %s91 = sadd.s32 %s90, 1
      %p94 = scmp.eq.s32.totalorder %s18, 7
      %p95 = scmp.ne.s32.totalorder %s90, %s92
      %p96 = scmp.eq.s32.totalorder %s18, 0
      %p97 = por %p95, %p96
      %p98 = scmp.ne.s32.totalorder %s90, %s92
      %p99 = scmp.eq.s32.totalorder %s23, 7
      %p100 = por %p98, %p99
      %p101 = scmp.ne.s32.totalorder %s92, %s93
      %p102 = scmp.eq.s32.totalorder %s23, 0
      %p103 = por %p101, %p102
      %p104 = scmp.ne.s32.totalorder %s92, %s93
      %p105 = scmp.eq.s32.totalorder %s24, 7
      %p106 = por %p104, %p105
      %p108 = scmp.ne.s32.totalorder %s93, %s107
      %p109 = scmp.eq.s32.totalorder %s24, 0
      %p110 = por %p108, %p109
      %s111 = ssub.s32 %s25, %s37
      %s112 = ssub.s32 %s26, %s33
      %s113 = sor.u32 %s111, %s112
      %p114 = scmp.eq.s32.totalorder %s113, 0
      %s116 = sadd.s32 %s115, 1
      %s117 = scalar_select %p114, %s115, %s116
      %p120 = pneg %p114
      %p121 = scmp.eq.s32.totalorder %s18, 7
      %p122 = por %p120, %p121
      %p123 = scmp.ne.s32.totalorder %s115, %s118
      %p124 = scmp.eq.s32.totalorder %s18, 0
      %p125 = por %p123, %p124
      %p126 = scmp.ne.s32.totalorder %s115, %s118
      %p127 = scmp.eq.s32.totalorder %s23, 7
      %p128 = por %p126, %p127
      %p129 = scmp.ne.s32.totalorder %s118, %s119
      %p130 = scmp.eq.s32.totalorder %s23, 0
      %p131 = por %p129, %p130
      %p132 = scmp.ne.s32.totalorder %s118, %s119
      %p133 = scmp.eq.s32.totalorder %s24, 7
      %p134 = por %p132, %p133
      %p136 = scmp.ne.s32.totalorder %s119, %s135
      %p137 = scmp.eq.s32.totalorder %s24, 0
      %p138 = por %p136, %p137
      %s140 = sadd.s32 %s139, 1
      %p143 = scmp.eq.s32.totalorder %s18, 7
      %p144 = scmp.ne.s32.totalorder %s139, %s141
      %p145 = scmp.eq.s32.totalorder %s18, 0
      %p146 = por %p144, %p145
      %p147 = scmp.ne.s32.totalorder %s139, %s141
      %p148 = scmp.eq.s32.totalorder %s23, 7
      %p149 = por %p147, %p148
      %p150 = scmp.ne.s32.totalorder %s141, %s142
      %p151 = scmp.eq.s32.totalorder %s23, 0
      %p152 = por %p150, %p151
      %p153 = scmp.ne.s32.totalorder %s141, %s142
      %p154 = scmp.eq.s32.totalorder %s24, 7
      %p155 = por %p153, %p154
      %p157 = scmp.ne.s32.totalorder %s142, %s156
      %p158 = scmp.eq.s32.totalorder %s24, 0
      %p159 = por %p157, %p158
      %p160 = scmp.le.s32.totalorder 1, %s18
      %p161 = scmp.lt.s32.totalorder %s18, 9
      %p162 = pnand %p160, %p161
      %p163 = pneg %p162
      // Predicated region
      $region9: #{criterion_dsn.3} parent=5 // pred_check
        _
      $region10: #{criterion_dsn.3} parent=5 // pred_check_branch
        %165 = sbr.rel (%p162) target = $region12
      $region11: #{criterion_dsn.3} parent=5 // pred_region
        %s166 = ssub.s32 %s18, 1
        // Predicated region
        $region13: #{criterion_dsn.3} parent=11 // pred_check
          %p167 = pneg %p82
        $region14: #{criterion_dsn.3} parent=11 // pred_check_branch
          %169 = sbr.rel (%p167) target = $region16
        $region15: #{criterion_dsn.3} parent=11 // pred_region
          %s170 = smul.u32 2, %s28
          %172 = vsyncadd [#allocation7], 0
          %s173 = smul.addr %s170, 8
          %s174 = scalar_lea.hbm %s1, %s173
          %s175 = sshll.u32 %s174, 4
          %s176 = int_to_ptr.hbm [resolvable:$true] %s175
          %s177 = sshll.u32 [#allocation6], 4
          %s178 = int_to_ptr.vmem [resolvable:$true] %s177
          %183 = dma.hbm_to_vmem [thread:$0]  %s176, 256, %s178, [#allocation7], 128, 128, 8
        $region16: #{criterion_dsn.3} parent=11 // pred_fallthru
          _
        // Predicated region
        $region17: #{criterion_dsn.3} parent=11 // pred_check
          %p184 = pneg %p103
        $region18: #{criterion_dsn.3} parent=11 // pred_check_branch
          %186 = sbr.rel (%p184) target = $region20
        $region19: #{criterion_dsn.3} parent=11 // pred_region
          %188 = vsyncadd [#allocation7], 0
          %s189 = sshll.u32 %s2, 4
          %s190 = int_to_ptr.hbm [resolvable:$true] %s189
          %s191 = sshll.u32 [#allocation8], 4
          %s192 = int_to_ptr.vmem [resolvable:$true] %s191
          %197 = dma.hbm_to_vmem [thread:$0]  %s190, 256, %s192, [#allocation7], 128, 128, 8
        $region20: #{criterion_dsn.3} parent=11 // pred_fallthru
          _
      $region12: #{criterion_dsn.3} parent=5 // pred_fallthru
        _
      %p198 = scmp.lt.s32.totalorder %s18, 8
      // Predicated region
      $region21: #{criterion_dsn.3} parent=5 // pred_check
        %p199 = pneg %p198
      $region22: #{criterion_dsn.3} parent=5 // pred_check_branch
        %201 = sbr.rel (%p199) target = $region24
      $region23: #{criterion_dsn.3} parent=5 // pred_region
        // Predicated region
        $region25: #{criterion_dsn.3} parent=23 // pred_check
          %p202 = pneg %p50
        $region26: #{criterion_dsn.3} parent=23 // pred_check_branch
          %204 = sbr.rel (%p202) target = $region28
        $region27: #{criterion_dsn.3} parent=23 // pred_region
          %s205 = sand.u32 %s40, 1
          %s206 = scalar_lea.sflag [#allocation4], %s205
          %s207 = sand.u32 %s40, 1
          %s208 = smul.addr %s207, 16
          %s209 = scalar_lea.vmem [#allocation3], %s208
          %211 = vsyncadd %s206, 0
          %s212 = smul.addr %s25, 2
          %s213 = smul.addr %s212, 8
          %s214 = scalar_lea.hbm %s0, %s213
          %s215 = sshll.u32 %s214, 4
          %s216 = int_to_ptr.hbm [resolvable:$true] %s215
          %s217 = sshll.u32 %s209, 4
          %s218 = int_to_ptr.vmem [resolvable:$true] %s217
          %223 = dma.hbm_to_vmem [thread:$0]  %s216, 256, %s218, %s206, 128, 128, 8
        $region28: #{criterion_dsn.3} parent=23 // pred_fallthru
          _
        // Predicated region
        $region29: #{criterion_dsn.3} parent=23 // pred_check
          %p224 = pneg %p125
        $region30: #{criterion_dsn.3} parent=23 // pred_check_branch
          %226 = sbr.rel (%p224) target = $region32
        $region31: #{criterion_dsn.3} parent=23 // pred_region
          %s227 = sand.u32 %s115, 1
          %s228 = scalar_lea.sflag [#allocation10], %s227
          %s229 = sand.u32 %s115, 1
          %s230 = smul.addr %s229, 16
          %s231 = scalar_lea.vmem [#allocation9], %s230
          %s232 = smul.u32 2, %s26
          %234 = vsyncadd %s228, 0
          %s235 = smul.addr %s25, 2
          %s236 = sadd.s32 %s232, %s235
          %s237 = smul.addr %s236, 8
          %s238 = scalar_lea.hbm %s3, %s237
          %s239 = sshll.u32 %s238, 4
          %s240 = int_to_ptr.hbm [resolvable:$true] %s239
          %s241 = sshll.u32 %s231, 4
          %s242 = int_to_ptr.vmem [resolvable:$true] %s241
          %247 = dma.hbm_to_vmem [thread:$0]  %s240, 256, %s242, %s228, 128, 128, 8
        $region32: #{criterion_dsn.3} parent=23 // pred_fallthru
          _
      $region24: #{criterion_dsn.3} parent=5 // pred_fallthru
        _
      %p248 = scmp.le.s32.totalorder 1, %s18
      %p249 = scmp.lt.s32.totalorder %s18, 9
      %p250 = pnand %p248, %p249
      %p251 = pneg %p250
      // Predicated region
      $region33: #{criterion_dsn.3} parent=5 // pred_check
        _
      $region34: #{criterion_dsn.3} parent=5 // pred_check_branch
        %253 = sbr.rel (%p250) target = $region36
      $region35: #{criterion_dsn.3} parent=5 // pred_region
        %s254 = ssub.s32 %s18, 1
        %s255 = sand.u32 %s43, 1
        %s256 = scalar_lea.sflag [#allocation4], %s255
        %s257 = sand.u32 %s43, 1
        %s258 = smul.addr %s257, 16
        %s259 = scalar_lea.vmem [#allocation3], %s258
        // Predicated region
        $region37: #{criterion_dsn.3} parent=35 // pred_check
          %p260 = pneg %p56
        $region38: #{criterion_dsn.3} parent=35 // pred_check_branch
          %262 = sbr.rel (%p260) target = $region40
        $region39: #{criterion_dsn.3} parent=35 // pred_region
          %264 = dma.done %s256, 256
        $region40: #{criterion_dsn.3} parent=35 // pred_fallthru
          _
        // Predicated region
        $region41: #{criterion_dsn.3} parent=35 // pred_check
          %p265 = pneg %p82
        $region42: #{criterion_dsn.3} parent=35 // pred_check_branch
          %267 = sbr.rel (%p265) target = $region44
        $region43: #{criterion_dsn.3} parent=35 // pred_region
          %269 = dma.done [#allocation7], 256
        $region44: #{criterion_dsn.3} parent=35 // pred_fallthru
          _
        // Predicated region
        $region45: #{criterion_dsn.3} parent=35 // pred_check
          %p270 = pneg %p103
        $region46: #{criterion_dsn.3} parent=35 // pred_check_branch
          %272 = sbr.rel (%p270) target = $region48
        $region47: #{criterion_dsn.3} parent=35 // pred_region
          %274 = dma.done [#allocation7], 256
        $region48: #{criterion_dsn.3} parent=35 // pred_fallthru
          _
        %s275 = sand.u32 %s118, 1
        %s276 = scalar_lea.sflag [#allocation10], %s275
        %s277 = sand.u32 %s118, 1
        %s278 = smul.addr %s277, 16
        %s279 = scalar_lea.vmem [#allocation9], %s278
        // Predicated region
        $region49: #{criterion_dsn.3} parent=35 // pred_check
          %p280 = pneg %p131
        $region50: #{criterion_dsn.3} parent=35 // pred_check_branch
          %282 = sbr.rel (%p280) target = $region52
        $region51: #{criterion_dsn.3} parent=35 // pred_region
          %284 = dma.done %s276, 256
        $region52: #{criterion_dsn.3} parent=35 // pred_fallthru
          _
        %s285 = sand.u32 %s43, 1
        %s286 = scalar_lea.sflag [#allocation4], %s285
        %s287 = sand.u32 %s43, 1
        %s288 = smul.addr %s287, 16
        %s289 = scalar_lea.vmem [#allocation3], %s288
        %p290 = pneg %p56
        %p291 = pneg %p53
        %p292 = pneg %p82
        %p293 = pneg %p79
        %p294 = pneg %p103
        %p295 = pneg %p100
        %s296 = sand.u32 %s118, 1
        %s297 = scalar_lea.sflag [#allocation10], %s296
        %s298 = sand.u32 %s118, 1
        %s299 = smul.addr %s298, 16
        %s300 = scalar_lea.vmem [#allocation9], %s299
        %p301 = pneg %p131
        %p302 = pneg %p128
        %p303 = pneg %p152
        %p304 = pneg %p149
        %s305 = smul.u32 2, %s28
        %s306 = smul.u32 2, %s28
        %p307 = scmp.eq.s32.totalorder %s27, 0
        %p308 = scmp.eq.s32.totalorder %s28, 0
        %p309 = pnand %p307, %p308
        %p310 = pneg %p309
        %p311 = scmp.eq.s32.totalorder %s27, 7
        %p312 = pnand %p311, %p308
        %p313 = pneg %p312
        // Predicated region
        $region53: #{criterion_dsn.3} parent=35 // pred_check
          _
        $region54: #{criterion_dsn.3} parent=35 // pred_check_branch
          %315 = sbr.rel (%p309) target = $region56
        $region55: #{criterion_dsn.3} parent=35 // pred_region
          %vm316 = vcmask 130048
          %317 = vst.msk [vmem:[#allocation2] sm:$0xff] %vm316, 0.0
          %318 = vst.msk [vmem:[#allocation2 + $0x8] sm:$0xff] %vm316, 0.0
        $region56: #{criterion_dsn.3} parent=35 // pred_fallthru
          _
        %v319 = vld [vmem:[%s259] sm:$0xff]
        %v320 = vld [vmem:[%s259 + $0x8] sm:$0xff]
        %v321 = vld [vmem:[#allocation6] sm:$0xff]
        %v322 = vld [vmem:[#allocation6 + $0x8] sm:$0xff]
        %vm323 = vcmask 130048
        %v325 = vsel %vm323, %v321, 0
        %v328 = vsel %vm323, %v322, 0
        %330 = vmatpush.msra.mxu0 0.0
        %331 = vmatpush.msra.mxu0 0.0
        %332 = vmatpush.msra.mxu0 0.0
        %333 = vmatpush.msra.mxu0 0.0
        %334 = vmatpush.msra.mxu0 0.0
        %335 = vmatpush.msra.mxu0 0.0
        %336 = vmatpush.msra.mxu0 0.0
        %337 = vmatpush.msra.mxu0 0.0
        %338 = vmatpush.msra.mxu0 0.0
        %339 = vmatpush.msra.mxu0 0.0
        %340 = vmatpush.msra.mxu0 0.0
        %341 = vmatpush.msra.mxu0 0.0
        %342 = vmatpush.msra.mxu0 0.0
        %343 = vmatpush.msra.mxu0 0.0
        %344 = vmatpush.msra.mxu0 %v320
        %345 = vmatpush.msra.mxu0 %v319
        %346 = vmatmul.f32.gmra.mxu0 %v325
        %v347 = vpop.f32.mrf.mxu0
        %v348 = vadd.f32 0.0, %v347
        %349 = vmatmul.f32.gmra.mxu0 %v328
        %v350 = vpop.f32.mrf.mxu0
        %v351 = vadd.f32 0.0, %v350
        %352 = vdwg.mxu0
        %v353 = vld [vmem:[#allocation8] sm:$0xff]
        %v354 = vld [vmem:[#allocation8 + $0x8] sm:$0xff]
        %v356 = vsel %vm323, %v348, 0
        %v359 = vsel %vm323, %v351, 0
        %361 = vmatpush.msra.mxu0 0.0
        %362 = vmatpush.msra.mxu0 0.0
        %363 = vmatpush.msra.mxu0 0.0
        %364 = vmatpush.msra.mxu0 0.0
        %365 = vmatpush.msra.mxu0 0.0
        %366 = vmatpush.msra.mxu0 0.0
        %367 = vmatpush.msra.mxu0 0.0
        %368 = vmatpush.msra.mxu0 0.0
        %369 = vmatpush.msra.mxu0 0.0
        %370 = vmatpush.msra.mxu0 0.0
        %371 = vmatpush.msra.mxu0 0.0
        %372 = vmatpush.msra.mxu0 0.0
        %373 = vmatpush.msra.mxu0 0.0
        %374 = vmatpush.msra.mxu0 0.0
        %375 = vmatpush.msra.mxu0 %v354
        %376 = vmatpush.msra.mxu0 %v353
        %377 = vmatmul.f32.gmra.mxu0 %v356
        %v378 = vpop.f32.mrf.mxu0
        %v379 = vadd.f32 0.0, %v378
        %380 = vmatmul.f32.gmra.mxu0 %v359
        %v381 = vpop.f32.mrf.mxu0
        %v382 = vadd.f32 0.0, %v381
        %383 = vdwg.mxu0
        %v384 = vld [vmem:[%s279] sm:$0xff]
        %v385 = vld [vmem:[%s279 + $0x8] sm:$0xff]
        %v386 = vmax.f32 %v379, 0.0
        %v387 = vmax.f32 %v382, 0.0
        %v388 = vmul.f32 %v379, %v384
        %v389 = vmul.f32 %v382, %v385
        %v390 = vsub.f32 %v386, %v388
        %v391 = vsub.f32 %v387, %v389
        %v392 = vand.u32 2147483647, %v379
        %v393 = vand.u32 2147483647, %v382
        %v394 = vsub.f32 0.0, %v392
        %v395 = vsub.f32 0.0, %v393
        %v396 = vmul.f32 %v394, 1.442695
        %v397 = vpow.pop %v396
        %v398 = vmul.f32 %v395, 1.442695
        %v399 = vpow.pop %v398
        %v400 = vadd.f32 %v397, 1.0
        %v401 = vadd.f32 %v399, 1.0
        %v402 = vlog2.pop %v400
        %v403 = vmul.f32 %v402, 0.6931472
        %v404 = vlog2.pop %v401
        %v405 = vmul.f32 %v404, 0.6931472
        %v406 = vadd.f32 %v390, %v403
        %v407 = vadd.f32 %v391, %v405
        %v408 = vld [vmem:[#allocation2] sm:$0xff]
        %v409 = vld [vmem:[#allocation2 + $0x8] sm:$0xff]
        %v410 = vadd.f32 %v408, %v406
        %v411 = vadd.f32 %v409, %v407
        %412 = vst.msk [vmem:[#allocation2] sm:$0xff] %vm323, %v410
        %413 = vst.msk [vmem:[#allocation2 + $0x8] sm:$0xff] %vm323, %v411
        // Predicated region
        $region57: #{criterion_dsn.3} parent=35 // pred_check
          _
        $region58: #{criterion_dsn.3} parent=35 // pred_check_branch
          %415 = sbr.rel (%p312) target = $region60
        $region59: #{criterion_dsn.3} parent=35 // pred_region
          %v416 = vld [vmem:[#allocation2] sm:$0xff]
          %v417 = vld [vmem:[#allocation2 + $0x8] sm:$0xff]
          %v418 = vsel %vm323, %v416, 0.0
          %v419 = vsel %vm323, %v417, 0.0
          %v420 = vadd.f32 %v418, %v419
          %421 = vadd.xlane.f32.xlu0 %v420
          %v422 = vpop.xlane.xlu0 %421
          %v423 = vrot.slane %v422, 4
          %v424 = vadd.f32 %v422, %v423
          %v425 = vrot.slane %v424, 2
          %v426 = vadd.f32 %v424, %v425
          %v427 = vrot.slane %v426, 1
          %v428 = vadd.f32 %v426, %v427
          %s429 = vtos %v428
          %v430 = vstv %s429
          %vm431 = vcmask 0
          %432 = vst.msk [vmem:[#allocation11] sm:$0x1] %vm431, %v430
        $region60: #{criterion_dsn.3} parent=35 // pred_fallthru
          _
        // Predicated region
        $region61: #{criterion_dsn.3} parent=35 // pred_check
          %p433 = pneg %p149
        $region62: #{criterion_dsn.3} parent=35 // pred_check_branch
          %435 = sbr.rel (%p433) target = $region64
        $region63: #{criterion_dsn.3} parent=35 // pred_region
          %437 = vsyncadd [#allocation5], 0
          %s439 = sshll.u32 [#allocation11], 4
          %s440 = int_to_ptr.vmem [resolvable:$true] %s439
          %s441 = sshll.u32 %s4, 4
          %s442 = int_to_ptr.hbm [resolvable:$true] %s441
          %444 = dma.vmem_to_hbm [thread:$0]  %s440, 16, %s442, [#allocation5]
        $region64: #{criterion_dsn.3} parent=35 // pred_fallthru
          _
        // Predicated region
        $region65: #{criterion_dsn.3} parent=35 // pred_check
          %p445 = pneg %p149
        $region66: #{criterion_dsn.3} parent=35 // pred_check_branch
          %447 = sbr.rel (%p445) target = $region68
        $region67: #{criterion_dsn.3} parent=35 // pred_region
          %449 = dma.done [#allocation5], 16
        $region68: #{criterion_dsn.3} parent=35 // pred_fallthru
          _
      $region36: #{criterion_dsn.3} parent=5 // pred_fallthru
        _
      %p450 = scmp.le.s32.totalorder 2, %s18
      // Predicated region
      $region69: #{criterion_dsn.3} parent=5 // pred_check
        %p451 = pneg %p450
      $region70: #{criterion_dsn.3} parent=5 // pred_check_branch
        %453 = sbr.rel (%p451) target = $region72
      $region71: #{criterion_dsn.3} parent=5 // pred_region
        %s454 = ssub.s32 %s18, 2
      $region72: #{criterion_dsn.3} parent=5 // pred_fallthru
        _
    $region6: #{criterion_dsn.3} parent=1 // loop_footer
      %s22 = sadd.s32 1, %s18
    $region7: #{criterion_dsn.3} parent=1 // loop_footer_branch
      %17 = sbr.rel target = $region3
    $region8: #{criterion_dsn.3} parent=1 // loop_exit
      _
    %455 = vsyncpa [#allocation4], 1
    %s456 = scalar_lea.sflag [#allocation4], 1
    %457 = vsyncpa %s456, 1
    %458 = vsyncpa [#allocation7], 1
    %459 = vsyncpa [#allocation10], 1
    %s460 = scalar_lea.sflag [#allocation10], 1
    %461 = vsyncpa %s460, 1
    %462 = vsyncpa [#allocation5], 1
    %s463 = scalar_lea.sflag [#allocation5], 1
    %464 = vsyncpa %s463, 1

</llo_original>
